<compile_context>
chip_gen: v7x
topology: tpu7x:2x2x1
jax: 0.10.0
libtpu: 0.0.40
codegen_flags: <defaults>
</compile_context>

<pallas_src>
import functools

import jax
import jax.numpy as jnp
from jax.experimental import pallas as pl
from jax.experimental.pallas import tpu as pltpu

LANE = 128     # f32 lane width
SUBLANE = 8    # f32 sublane width


def _round_up(n: int, m: int) -> int:
    return ((n + m - 1) // m) * m


def dueling_dqn_kernel(x_ref, w1_ref, b1_ref, w1av_ref, b1av_ref,
                       w2a_ref, b2a_ref, out_ref, *,
                       batch, out_size, h_pad, b_pad):
    # Stage 1: y = relu(linear1(x))                               (Bp, H_PAD)
    x = x_ref[...]
    y = jnp.dot(x, w1_ref[...], preferred_element_type=jnp.float32) + b1_ref[...]
    y = jnp.maximum(y, 0.0)

    # Stage 2 (fused): [value | adv] = relu(y @ [W_adv | W_val])  (Bp, 2*H_PAD)
    va = jnp.dot(y, w1av_ref[...], preferred_element_type=jnp.float32) + b1av_ref[...]
    va = jnp.maximum(va, 0.0)
    value_h = va[:, :h_pad]          # lane-aligned slice (multiple of 128)
    adv_h = va[:, h_pad:]

    # Stage 3 (fused): both branches use the SAME linear2_adv weights
    # (PyTorch forward quirk, reproduced exactly) -> stack along the batch
    # (sublane) axis and do one matmul instead of two.
    stacked = jnp.concatenate([value_h, adv_h], axis=0)           # (2*Bp, H_PAD)
    out2 = (jnp.dot(stacked, w2a_ref[...], preferred_element_type=jnp.float32)
            + b2a_ref[...])
    value = out2[:b_pad, :]          # sublane-aligned split (Bp % 8 == 0)
    adv = out2[b_pad:, :]

    # adv.mean() over ALL real elements (batch x actions).  Padded output
    # columns of adv are exactly zero (zero weight columns / zero biases), so
    # a full-width sum only needs padded *rows* masked out.
    if b_pad == batch:
        adv_sum = jnp.sum(adv)
    else:
        row = jax.lax.broadcasted_iota(jnp.int32, adv.shape, 0)
        adv_sum = jnp.sum(jnp.where(row < batch, adv, 0.0))
    adv_mean = adv_sum / jnp.float32(batch * out_size)

    # Lane-dense (Bp, O_PAD) unmasked store; real slab sliced in the wrapper.
    out_ref[...] = value + (adv - adv_mean)


def pack_params(params, input_size, hidden_size, output_size):
    """Zero-pad to lane width and fuse linear1_adv|linear1_val."""
    w1, b1, w1a, b1a, w1v, b1v, w2a, b2a = params
    h_pad = _round_up(hidden_size, LANE)
    o_pad = _round_up(output_size, LANE)

    w1p = jnp.zeros((input_size, h_pad), jnp.float32).at[:, :hidden_size].set(w1)
    b1p = jnp.zeros((1, h_pad), jnp.float32).at[0, :hidden_size].set(b1)

    # NOTE PyTorch forward quirk: `value` comes from linear1_adv, `adv` from
    # linear1_val.  First H_PAD output columns = value branch, last = adv.
    w1av = (jnp.zeros((h_pad, 2 * h_pad), jnp.float32)
            .at[:hidden_size, :hidden_size].set(w1a)
            .at[:hidden_size, h_pad:h_pad + hidden_size].set(w1v))
    b1av = (jnp.zeros((1, 2 * h_pad), jnp.float32)
            .at[0, :hidden_size].set(b1a)
            .at[0, h_pad:h_pad + hidden_size].set(b1v))

    w2p = jnp.zeros((h_pad, o_pad), jnp.float32).at[:hidden_size, :output_size].set(w2a)
    b2p = jnp.zeros((1, o_pad), jnp.float32).at[0, :output_size].set(b2a)
    return w1p, b1p, w1av, b1av, w2p, b2p


def dueling_dqn_forward(x, params, hidden_size, output_size):
    batch, input_size = x.shape
    b_pad = _round_up(max(batch, SUBLANE), SUBLANE)
    h_pad = _round_up(hidden_size, LANE)
    o_pad = _round_up(output_size, LANE)

    packed = pack_params(params, input_size, hidden_size, output_size)

    xp = x
    if b_pad != batch:
        xp = jnp.zeros((b_pad, input_size), x.dtype).at[:batch].set(x)

    kernel = functools.partial(
        dueling_dqn_kernel,
        batch=batch, out_size=output_size, h_pad=h_pad, b_pad=b_pad)

    vmem = pl.BlockSpec(memory_space=pltpu.MemorySpace.VMEM)
    out = pl.pallas_call(
        kernel,
        out_shape=jax.ShapeDtypeStruct((b_pad, o_pad), jnp.float32),
        in_specs=[vmem] * 7,
        out_specs=vmem,
    )(xp, *packed)
    return out[:batch, :output_size]


def init_params(key, input_size, hidden_size, output_size):
    """Deterministic synthetic init. Weights already transposed to (in, out)."""
    ks = jax.random.split(key, 10)

    def lin(kw, kb, fan_in, fan_out):
        bound = 1.0 / jnp.sqrt(jnp.float32(fan_in))
        w = jax.random.uniform(kw, (fan_in, fan_out), jnp.float32, -bound, bound)
        b = jax.random.uniform(kb, (fan_out,), jnp.float32, -bound, bound)
        return w, b

    w1, b1 = lin(ks[0], ks[1], input_size, hidden_size)      # linear1
    w1a, b1a = lin(ks[2], ks[3], hidden_size, hidden_size)   # linear1_adv
    w1v, b1v = lin(ks[4], ks[5], hidden_size, hidden_size)   # linear1_val
    w2a, b2a = lin(ks[6], ks[7], hidden_size, output_size)   # linear2_adv
    # linear2_val exists in __init__ but is unused in forward; omitted on purpose.
    return (w1, b1, w1a, b1a, w1v, b1v, w2a, b2a)


def reference_forward(x, params):
    (w1, b1, w1a, b1a, w1v, b1v, w2a, b2a) = params
    y = jax.nn.relu(x @ w1 + b1)
    value = jax.nn.relu(y @ w1a + b1a)
    adv = jax.nn.relu(y @ w1v + b1v)
    value = value @ w2a + b2a
    adv = adv @ w2a + b2a
    return value + (adv - jnp.mean(adv))


if __name__ == "__main__":
    key = jax.random.PRNGKey(0)
    k_x, k_p = jax.random.split(key)

    batch, input_size, hidden_size, output_size = 8, 16, 32, 4
    x = jax.random.normal(k_x, (batch, input_size), jnp.float32)
    params = init_params(k_p, input_size, hidden_size, output_size)

    out = dueling_dqn_forward(x, params, hidden_size, output_size)
    out = jax.block_until_ready(out)

    ref = reference_forward(x, params)
    assert out.shape == (batch, output_size)
    assert jnp.allclose(out, ref, atol=1e-5, rtol=1e-5), "mismatch vs reference"

    print("KERNEL_OK")
</pallas_src>

<mosaic_0001>
module attributes {stable_mosaic.version = 11 : i64} {
  func.func @dueling_dqn_kernel(%arg0: memref<8x16xf32, #tpu.memory_space<vmem>>, %arg1: memref<16x128xf32, #tpu.memory_space<vmem>>, %arg2: memref<1x128xf32, #tpu.memory_space<vmem>>, %arg3: memref<128x256xf32, #tpu.memory_space<vmem>>, %arg4: memref<1x256xf32, #tpu.memory_space<vmem>>, %arg5: memref<128x128xf32, #tpu.memory_space<vmem>>, %arg6: memref<1x128xf32, #tpu.memory_space<vmem>>, %arg7: memref<8x128xf32, #tpu.memory_space<vmem>>) attributes {dimension_semantics = [], scalar_prefetch = 0 : i64, scratch_operands = 0 : i64, tpu.core_type = #tpu.core_type<tc>} {
    %c0 = arith.constant 0 : index
    %c0_0 = arith.constant 0 : index
    %0 = vector.load %arg0[%c0, %c0_0] : memref<8x16xf32, #tpu.memory_space<vmem>>, vector<8x16xf32>
    %c0_1 = arith.constant 0 : index
    %c0_2 = arith.constant 0 : index
    %1 = vector.load %arg1[%c0_1, %c0_2] : memref<16x128xf32, #tpu.memory_space<vmem>>, vector<16x128xf32>
    %cst = arith.constant dense<0.000000e+00> : vector<8x128xf32>
    %2 = tpu.matmul %0, %1, %cst {dimension_numbers = #tpu.dot_dimension_numbers<[1], [0], [0], [1], [0, 0, 1, 1], [], []>} : vector<8x16xf32>, vector<16x128xf32>, vector<8x128xf32> -> vector<8x128xf32>
    %c0_3 = arith.constant 0 : index
    %c0_4 = arith.constant 0 : index
    %3 = vector.load %arg2[%c0_3, %c0_4] : memref<1x128xf32, #tpu.memory_space<vmem>>, vector<1x128xf32>
    %4 = vector.broadcast %3 : vector<1x128xf32> to vector<8x128xf32>
    %5 = arith.addf %2, %4 : vector<8x128xf32>
    %cst_5 = arith.constant 0.000000e+00 : f32
    %6 = vector.broadcast %cst_5 : f32 to vector<8x128xf32>
    %7 = arith.maximumf %5, %6 : vector<8x128xf32>
    %c0_6 = arith.constant 0 : index
    %c0_7 = arith.constant 0 : index
    %8 = vector.load %arg3[%c0_6, %c0_7] : memref<128x256xf32, #tpu.memory_space<vmem>>, vector<128x256xf32>
    %cst_8 = arith.constant dense<0.000000e+00> : vector<8x256xf32>
    %9 = tpu.matmul %7, %8, %cst_8 {dimension_numbers = #tpu.dot_dimension_numbers<[1], [0], [0], [1], [0, 0, 1, 1], [], []>} : vector<8x128xf32>, vector<128x256xf32>, vector<8x256xf32> -> vector<8x256xf32>
    %c0_9 = arith.constant 0 : index
    %c0_10 = arith.constant 0 : index
    %10 = vector.load %arg4[%c0_9, %c0_10] : memref<1x256xf32, #tpu.memory_space<vmem>>, vector<1x256xf32>
    %11 = vector.broadcast %10 : vector<1x256xf32> to vector<8x256xf32>
    %12 = arith.addf %9, %11 : vector<8x256xf32>
    %cst_11 = arith.constant 0.000000e+00 : f32
    %13 = vector.broadcast %cst_11 : f32 to vector<8x256xf32>
    %14 = arith.maximumf %12, %13 : vector<8x256xf32>
    %15 = vector.extract_strided_slice %14 {offsets = [0, 0], sizes = [8, 128], strides = [1, 1]} : vector<8x256xf32> to vector<8x128xf32>
    %16 = vector.extract_strided_slice %14 {offsets = [0, 128], sizes = [8, 128], strides = [1, 1]} : vector<8x256xf32> to vector<8x128xf32>
    %17 = tpu.concatenate %15, %16 in 0 : vector<8x128xf32>, vector<8x128xf32> -> vector<16x128xf32>
    %c0_12 = arith.constant 0 : index
    %c0_13 = arith.constant 0 : index
    %18 = vector.load %arg5[%c0_12, %c0_13] : memref<128x128xf32, #tpu.memory_space<vmem>>, vector<128x128xf32>
    %cst_14 = arith.constant dense<0.000000e+00> : vector<16x128xf32>
    %19 = tpu.matmul %17, %18, %cst_14 {dimension_numbers = #tpu.dot_dimension_numbers<[1], [0], [0], [1], [0, 0, 1, 1], [], []>} : vector<16x128xf32>, vector<128x128xf32>, vector<16x128xf32> -> vector<16x128xf32>
    %c0_15 = arith.constant 0 : index
    %c0_16 = arith.constant 0 : index
    %20 = vector.load %arg6[%c0_15, %c0_16] : memref<1x128xf32, #tpu.memory_space<vmem>>, vector<1x128xf32>
    %21 = vector.broadcast %20 : vector<1x128xf32> to vector<16x128xf32>
    %22 = arith.addf %19, %21 : vector<16x128xf32>
    %23 = vector.extract_strided_slice %22 {offsets = [0, 0], sizes = [8, 128], strides = [1, 1]} : vector<16x128xf32> to vector<8x128xf32>
    %24 = vector.extract_strided_slice %22 {offsets = [8, 0], sizes = [8, 128], strides = [1, 1]} : vector<16x128xf32> to vector<8x128xf32>
    %25 = vector.shape_cast %24 : vector<8x128xf32> to vector<1x8x128xf32>
    %cst_17 = arith.constant dense<0.000000e+00> : vector<1xf32>
    %26 = vector.multi_reduction <add>, %25, %cst_17 [1, 2] : vector<1x8x128xf32> to vector<1xf32>
    %27 = vector.shape_cast %26 : vector<1xf32> to vector<1x1x1xf32>
    %28 = vector.extract %27[0, 0, 0] : f32 from vector<1x1x1xf32>
    %cst_18 = arith.constant 3.200000e+01 : f32
    %29 = arith.divf %28, %cst_18 : f32
    %30 = vector.broadcast %29 : f32 to vector<8x128xf32>
    %31 = arith.subf %24, %30 : vector<8x128xf32>
    %32 = arith.addf %23, %31 : vector<8x128xf32>
    %c0_19 = arith.constant 0 : index
    %c0_20 = arith.constant 0 : index
    %33 = vector.load %arg7[%c0_19, %c0_20] : memref<8x128xf32, #tpu.memory_space<vmem>>, vector<8x128xf32>
    tpu.vector_store %arg7[%c0_19, %c0_20], %32 {strides = array<i32>} : memref<8x128xf32, #tpu.memory_space<vmem>>, vector<8x128xf32>,
    return
  }
}

</mosaic_0001>

<llo_original>
// kernel: tpu_custom_call.1
$region0: #{tpu_custom_call.1}
  #allocation0 [shape = 'u32[]', space=smem, size = 0x4, offset = 0x4, fixed_abs, tag = 'smem constant byte address 0x4 - core index']
  #allocation1 [shape = 'u32[144,128]{1,0:T(1,128)}', space=vmem, size = 0x12000, scoped, tag = 'internal scratch']
  %s0 = inlined_call_operand.hbm [shape: f32[8,16], index: 0, kind: input, shape index: {}]
  %s1 = inlined_call_operand.hbm [shape: f32[16,128], index: 1, kind: input, shape index: {}]
  %s2 = inlined_call_operand.vmem [shape: f32[1,128], index: 2, kind: input, shape index: {}]
  %s3 = inlined_call_operand.hbm [shape: f32[128,256], index: 3, kind: input, shape index: {}]
  %s4 = inlined_call_operand.vmem [shape: f32[1,256], index: 4, kind: input, shape index: {}]
  %s5 = inlined_call_operand.hbm [shape: f32[128,128], index: 5, kind: input, shape index: {}]
  %s6 = inlined_call_operand.vmem [shape: f32[1,128], index: 6, kind: input, shape index: {}]
  %s7 = inlined_call_operand.hbm [shape: f32[8,128], index: 7, kind: output, shape index: {}]
  %s8 = sld [smem:[#allocation0]]
  $region54: #{tpu_custom_call.1} parent=0
    _
  %s10 = ssub.s32 1, %s8
  %s11 = scalar_select 0, %s10, %s8
  $region1: #{tpu_custom_call.1} parent=0
    #allocation2 [shape = 'u8[4096]{0}', space=vmem, size = 0x1000, scoped, tag = 'input window, operand 0, single buffered']
    #allocation3 [shape = 's32[1]{0}', space=sflag, size = 0x4, scoped, tag = 'scoped memory for tpu_custom_call.1']
    #allocation4 [shape = 's32[1]{0}', space=sflag, size = 0x4, scoped, tag = 'scoped memory for tpu_custom_call.1']
    #allocation5 [shape = 'u8[8192]{0}', space=vmem, size = 0x2000, scoped, tag = 'input window, operand 1, single buffered']
    #allocation6 [shape = 's32[1]{0}', space=sflag, size = 0x4, scoped, tag = 'scoped memory for tpu_custom_call.1']
    #allocation7 [shape = 'u8[131072]{0}', space=vmem, size = 0x20000, scoped, tag = 'input window, operand 3, single buffered']
    #allocation8 [shape = 'u8[65536]{0}', space=vmem, size = 0x10000, scoped, tag = 'input window, operand 5, single buffered']
    #allocation9 [shape = 's32[1]{0}', space=sflag, size = 0x4, scoped, tag = 'scoped memory for tpu_custom_call.1']
    #allocation10 [shape = 'u8[4096]{0}', space=vmem, size = 0x1000, scoped, tag = 'output window, operand 0, single buffered']
    %12 = vsyncpa [#allocation3], 0
    %13 = vsyncpa [#allocation6], 0
    %14 = vsyncpa [#allocation9], 0
    %15 = vsyncpa [#allocation4], 0
    // Predicated region
    $region2: #{tpu_custom_call.1} parent=1 // pred_check
      _
    $region3: #{tpu_custom_call.1} parent=1 // pred_check_branch
      %17 = sbr.rel (0) target = $region5
    $region4: #{tpu_custom_call.1} parent=1 // pred_region
      %s19 = ssub.s32 128, 128
      %20 = vsyncadd [#allocation3], %s19
      %s22 = sshll.u32 [#allocation2], 4
      %s23 = int_to_ptr.vmem [resolvable:$true] %s22
      %25 = dma.hbm_to_vmem [thread:$0]  %s0, 128, %s23, [#allocation3]
    $region5: #{tpu_custom_call.1} parent=1 // pred_fallthru
      _
    // Predicated region
    $region6: #{tpu_custom_call.1} parent=1 // pred_check
      _
    $region7: #{tpu_custom_call.1} parent=1 // pred_check_branch
      %27 = sbr.rel (0) target = $region9
    $region8: #{tpu_custom_call.1} parent=1 // pred_region
      %s29 = ssub.s32 256, 256
      %30 = vsyncadd [#allocation6], %s29
      %s31 = sshll.u32 [#allocation5], 4
      %s32 = int_to_ptr.vmem [resolvable:$true] %s31
      %37 = dma.hbm_to_vmem [thread:$0]  %s1, 256, %s32, [#allocation6], 128, 128, 8
    $region9: #{tpu_custom_call.1} parent=1 // pred_fallthru
      _
    // Predicated region
    $region10: #{tpu_custom_call.1} parent=1 // pred_check
      _
    $region11: #{tpu_custom_call.1} parent=1 // pred_check_branch
      %39 = sbr.rel (0) target = $region13
    $region12: #{tpu_custom_call.1} parent=1 // pred_region
      _
    $region13: #{tpu_custom_call.1} parent=1 // pred_fallthru
      _
    // Predicated region
    $region14: #{tpu_custom_call.1} parent=1 // pred_check
      _
    $region15: #{tpu_custom_call.1} parent=1 // pred_check_branch
      %41 = sbr.rel (0) target = $region17
    $region16: #{tpu_custom_call.1} parent=1 // pred_region
      %s43 = ssub.s32 4096, 4096
      %44 = vsyncadd [#allocation6], %s43
      %s45 = sshll.u32 [#allocation7], 4
      %s46 = int_to_ptr.vmem [resolvable:$true] %s45
      %51 = dma.hbm_to_vmem [thread:$0]  %s3, 4096, %s46, [#allocation6], 256, 256, 16
    $region17: #{tpu_custom_call.1} parent=1 // pred_fallthru
      _
    // Predicated region
    $region18: #{tpu_custom_call.1} parent=1 // pred_check
      _
    $region19: #{tpu_custom_call.1} parent=1 // pred_check_branch
      %53 = sbr.rel (0) target = $region21
    $region20: #{tpu_custom_call.1} parent=1 // pred_region
      _
    $region21: #{tpu_custom_call.1} parent=1 // pred_fallthru
      _
    // Predicated region
    $region22: #{tpu_custom_call.1} parent=1 // pred_check
      _
    $region23: #{tpu_custom_call.1} parent=1 // pred_check_branch
      %55 = sbr.rel (0) target = $region25
    $region24: #{tpu_custom_call.1} parent=1 // pred_region
      %s57 = ssub.s32 2048, 2048
      %58 = vsyncadd [#allocation9], %s57
      %s59 = sshll.u32 [#allocation8], 4
      %s60 = int_to_ptr.vmem [resolvable:$true] %s59
      %65 = dma.hbm_to_vmem [thread:$0]  %s5, 2048, %s60, [#allocation9], 128, 128, 8
    $region25: #{tpu_custom_call.1} parent=1 // pred_fallthru
      _
    // Predicated region
    $region26: #{tpu_custom_call.1} parent=1 // pred_check
      _
    $region27: #{tpu_custom_call.1} parent=1 // pred_check_branch
      %67 = sbr.rel (0) target = $region29
    $region28: #{tpu_custom_call.1} parent=1 // pred_region
      _
    $region29: #{tpu_custom_call.1} parent=1 // pred_fallthru
      _
    // Predicated region
    $region30: #{tpu_custom_call.1} parent=1 // pred_check
      _
    $region31: #{tpu_custom_call.1} parent=1 // pred_check_branch
      %69 = sbr.rel (0) target = $region33
    $region32: #{tpu_custom_call.1} parent=1 // pred_region
      %70 = dma.done [#allocation3], 128
    $region33: #{tpu_custom_call.1} parent=1 // pred_fallthru
      _
    // Predicated region
    $region34: #{tpu_custom_call.1} parent=1 // pred_check
      _
    $region35: #{tpu_custom_call.1} parent=1 // pred_check_branch
      %72 = sbr.rel (0) target = $region37
    $region36: #{tpu_custom_call.1} parent=1 // pred_region
      %73 = dma.done [#allocation6], 256
    $region37: #{tpu_custom_call.1} parent=1 // pred_fallthru
      _
    // Predicated region
    $region38: #{tpu_custom_call.1} parent=1 // pred_check
      _
    $region39: #{tpu_custom_call.1} parent=1 // pred_check_branch
      %75 = sbr.rel (0) target = $region41
    $region40: #{tpu_custom_call.1} parent=1 // pred_region
      %76 = dma.done [#allocation6], 4096
    $region41: #{tpu_custom_call.1} parent=1 // pred_fallthru
      _
    // Predicated region
    $region42: #{tpu_custom_call.1} parent=1 // pred_check
      _
    $region43: #{tpu_custom_call.1} parent=1 // pred_check_branch
      %78 = sbr.rel (0) target = $region45
    $region44: #{tpu_custom_call.1} parent=1 // pred_region
      %79 = dma.done [#allocation9], 2048
    $region45: #{tpu_custom_call.1} parent=1 // pred_fallthru
      _
    %v80 = vld [vmem:[#allocation2] sm:$0xff]
    %v81 = vld [vmem:[#allocation5] sm:$0xff]
    %v82 = vld [vmem:[#allocation5 + $0x8] sm:$0xff]
    %v83 = vld [vmem:[%s2] sm:$0x1]
    %v85 = vlaneseq
    %v86 = vshrl.u32 %v85, 7
    %v87 = vsub.s32 0, %v86
    %v88 = vrot.slane %v83, %v87
    %vm90 = vcmask 130048
    %v92 = vsel %vm90, %v80, 0
    %94 = vmatprep.subr.mxu0 0.0
    %95 = vmatpush1.msra.mxu0 %v81
    %96 = vmatprep.subr.mxu0 0.0
    %97 = vmatpush1.msra.mxu0 %v82
    %98 = vmatprep.subr.mxu0 0.0
    %99 = vmatpush1.msra.mxu0 0.0
    %100 = vmatprep.subr.mxu0 0.0
    %101 = vmatpush1.msra.mxu0 0.0
    %102 = vmatprep.subr.mxu0 0.0
    %103 = vmatpush1.msra.mxu0 0.0
    %104 = vmatprep.subr.mxu0 0.0
    %105 = vmatpush1.msra.mxu0 0.0
    %106 = vmatprep.subr.mxu0 0.0
    %107 = vmatpush1.msra.mxu0 0.0
    %108 = vmatprep.subr.mxu0 0.0
    %109 = vmatpush1.msra.mxu0 0.0
    %110 = vmatprep.subr.mxu0 0.0
    %111 = vmatpush1.msra.mxu0 0.0
    %112 = vmatprep.subr.mxu0 0.0
    %113 = vmatpush1.msra.mxu0 0.0
    %114 = vmatprep.subr.mxu0 0.0
    %115 = vmatpush1.msra.mxu0 0.0
    %116 = vmatprep.subr.mxu0 0.0
    %117 = vmatpush1.msra.mxu0 0.0
    %118 = vmatprep.subr.mxu0 0.0
    %119 = vmatpush1.msra.mxu0 0.0
    %120 = vmatprep.subr.mxu0 0.0
    %121 = vmatpush1.msra.mxu0 0.0
    %122 = vmatprep.subr.mxu0 0.0
    %123 = vmatpush1.msra.mxu0 0.0
    %124 = vmatprep.subr.mxu0 0.0
    %125 = vmatpush1.msra.mxu0 0.0
    %126 = vmatprep.subr.mxu0 0.0
    %127 = vmatpush1.msra.mxu0 0.0
    %128 = vmatprep.subr.mxu0 0.0
    %129 = vmatpush1.msra.mxu0 0.0
    %130 = vmatprep.subr.mxu0 0.0
    %131 = vmatpush1.msra.mxu0 0.0
    %132 = vmatprep.subr.mxu0 0.0
    %133 = vmatpush1.msra.mxu0 0.0
    %134 = vmatprep.subr.mxu0 0.0
    %135 = vmatpush1.msra.mxu0 0.0
    %136 = vmatprep.subr.mxu0 0.0
    %137 = vmatpush1.msra.mxu0 0.0
    %138 = vmatprep.subr.mxu0 0.0
    %139 = vmatpush1.msra.mxu0 0.0
    %140 = vmatprep.subr.mxu0 0.0
    %141 = vmatpush1.msra.mxu0 0.0
    %142 = vmatprep.subr.mxu0 0.0
    %143 = vmatpush1.msra.mxu0 0.0
    %144 = vmatprep.subr.mxu0 0.0
    %145 = vmatpush1.msra.mxu0 0.0
    %146 = vmatprep.subr.mxu0 0.0
    %147 = vmatpush1.msra.mxu0 0.0
    %148 = vmatprep.subr.mxu0 0.0
    %149 = vmatpush1.msra.mxu0 0.0
    %150 = vmatprep.subr.mxu0 0.0
    %151 = vmatpush1.msra.mxu0 0.0
    %152 = vmatprep.subr.mxu0 0.0
    %153 = vmatpush1.msra.mxu0 0.0
    %154 = vmatprep.subr.mxu0 0.0
    %155 = vmatpush1.msra.mxu0 0.0
    %156 = vmatprep.subr.mxu0 0.0
    %157 = vmatpush1.msra.mxu0 0.0
    %158 = vmatprep.mubr.f32.mxu0 0.0
    %159 = vmatmul.mubr.f32.gmra.mrb[0].mxu0 %v92
    %v160 = vpop.f32.mrb[0].mxu0
    %v161 = vadd.f32 %v88, %v160
    %v162 = vpop.f32.mrb[0].mxu0
    %163 = vdwg.mxu0
    %v164 = vmax.f32 %v161, 0.0
    %v165 = vld [vmem:[#allocation7] sm:$0xff]
    %v166 = vld [vmem:[#allocation7 + $0x8] sm:$0xff]
    %v167 = vld [vmem:[#allocation7 + $0x10] sm:$0xff]
    %v168 = vld [vmem:[#allocation7 + $0x18] sm:$0xff]
    %v169 = vld [vmem:[#allocation7 + $0x20] sm:$0xff]
    %v170 = vld [vmem:[#allocation7 + $0x28] sm:$0xff]
    %v171 = vld [vmem:[#allocation7 + $0x30] sm:$0xff]
    %v172 = vld [vmem:[#allocation7 + $0x38] sm:$0xff]
    %v173 = vld [vmem:[#allocation7 + $0x40] sm:$0xff]
    %v174 = vld [vmem:[#allocation7 + $0x48] sm:$0xff]
    %v175 = vld [vmem:[#allocation7 + $0x50] sm:$0xff]
    %v176 = vld [vmem:[#allocation7 + $0x58] sm:$0xff]
    %v177 = vld [vmem:[#allocation7 + $0x60] sm:$0xff]
    %v178 = vld [vmem:[#allocation7 + $0x68] sm:$0xff]
    %v179 = vld [vmem:[#allocation7 + $0x70] sm:$0xff]
    %v180 = vld [vmem:[#allocation7 + $0x78] sm:$0xff]
    %v181 = vld [vmem:[#allocation7 + $0x80] sm:$0xff]
    %v182 = vld [vmem:[#allocation7 + $0x88] sm:$0xff]
    %v183 = vld [vmem:[#allocation7 + $0x90] sm:$0xff]
    %v184 = vld [vmem:[#allocation7 + $0x98] sm:$0xff]
    %v185 = vld [vmem:[#allocation7 + $0xa0] sm:$0xff]
    %v186 = vld [vmem:[#allocation7 + $0xa8] sm:$0xff]
    %v187 = vld [vmem:[#allocation7 + $0xb0] sm:$0xff]
    %v188 = vld [vmem:[#allocation7 + $0xb8] sm:$0xff]
    %v189 = vld [vmem:[#allocation7 + $0xc0] sm:$0xff]
    %v190 = vld [vmem:[#allocation7 + $0xc8] sm:$0xff]
    %v191 = vld [vmem:[#allocation7 + $0xd0] sm:$0xff]
    %v192 = vld [vmem:[#allocation7 + $0xd8] sm:$0xff]
    %v193 = vld [vmem:[#allocation7 + $0xe0] sm:$0xff]
    %v194 = vld [vmem:[#allocation7 + $0xe8] sm:$0xff]
    %v195 = vld [vmem:[#allocation7 + $0xf0] sm:$0xff]
    %v196 = vld [vmem:[#allocation7 + $0xf8] sm:$0xff]
    %v197 = vld [vmem:[%s4] sm:$0x3]
    %v199 = vlaneseq
    %v200 = vshrl.u32 %v199, 7
    %v201 = vsub.s32 0, %v200
    %v202 = vrot.slane %v197, %v201
    %v203 = vlaneseq
    %v204 = vshrl.u32 %v203, 7
    %v205 = vsub.s32 1, %v204
    %v206 = vrot.slane %v197, %v205
    %209 = vmatprep.subr.mxu0 %v166
    %210 = vmatpush1.msra.mxu0 %v165
    %211 = vmatprep.subr.mxu0 %v168
    %212 = vmatpush1.msra.mxu0 %v167
    %213 = vmatprep.subr.mxu0 %v170
    %214 = vmatpush1.msra.mxu0 %v169
    %215 = vmatprep.subr.mxu0 %v172
    %216 = vmatpush1.msra.mxu0 %v171
    %217 = vmatprep.subr.mxu0 %v174
    %218 = vmatpush1.msra.mxu0 %v173
    %219 = vmatprep.subr.mxu0 %v176
    %220 = vmatpush1.msra.mxu0 %v175
    %221 = vmatprep.subr.mxu0 %v178
    %222 = vmatpush1.msra.mxu0 %v177
    %223 = vmatprep.subr.mxu0 %v180
    %224 = vmatpush1.msra.mxu0 %v179
    %225 = vmatprep.subr.mxu0 %v182
    %226 = vmatpush1.msra.mxu0 %v181
    %227 = vmatprep.subr.mxu0 %v184
    %228 = vmatpush1.msra.mxu0 %v183
    %229 = vmatprep.subr.mxu0 %v186
    %230 = vmatpush1.msra.mxu0 %v185
    %231 = vmatprep.subr.mxu0 %v188
    %232 = vmatpush1.msra.mxu0 %v187
    %233 = vmatprep.subr.mxu0 %v190
    %234 = vmatpush1.msra.mxu0 %v189
    %235 = vmatprep.subr.mxu0 %v192
    %236 = vmatpush1.msra.mxu0 %v191
    %237 = vmatprep.subr.mxu0 %v194
    %238 = vmatpush1.msra.mxu0 %v193
    %239 = vmatprep.subr.mxu0 %v196
    %240 = vmatpush1.msra.mxu0 %v195
    %241 = vmatprep.subr.mxu0 0.0
    %242 = vmatpush1.msra.mxu0 0.0
    %243 = vmatprep.subr.mxu0 0.0
    %244 = vmatpush1.msra.mxu0 0.0
    %245 = vmatprep.subr.mxu0 0.0
    %246 = vmatpush1.msra.mxu0 0.0
    %247 = vmatprep.subr.mxu0 0.0
    %248 = vmatpush1.msra.mxu0 0.0
    %249 = vmatprep.subr.mxu0 0.0
    %250 = vmatpush1.msra.mxu0 0.0
    %251 = vmatprep.subr.mxu0 0.0
    %252 = vmatpush1.msra.mxu0 0.0
    %253 = vmatprep.subr.mxu0 0.0
    %254 = vmatpush1.msra.mxu0 0.0
    %255 = vmatprep.subr.mxu0 0.0
    %256 = vmatpush1.msra.mxu0 0.0
    %257 = vmatprep.subr.mxu0 0.0
    %258 = vmatpush1.msra.mxu0 0.0
    %259 = vmatprep.subr.mxu0 0.0
    %260 = vmatpush1.msra.mxu0 0.0
    %261 = vmatprep.subr.mxu0 0.0
    %262 = vmatpush1.msra.mxu0 0.0
    %263 = vmatprep.subr.mxu0 0.0
    %264 = vmatpush1.msra.mxu0 0.0
    %265 = vmatprep.subr.mxu0 0.0
    %266 = vmatpush1.msra.mxu0 0.0
    %267 = vmatprep.subr.mxu0 0.0
    %268 = vmatpush1.msra.mxu0 0.0
    %269 = vmatprep.subr.mxu0 0.0
    %270 = vmatpush1.msra.mxu0 0.0
    %271 = vmatprep.subr.mxu0 0.0
    %272 = vmatpush1.msra.mxu0 0.0
    %273 = vmatprep.mubr.f32.mxu0 0.0
    %274 = vmatmul.mubr.f32.gmra.mrb[0].mxu0 %v164
    %v275 = vpop.f32.mrb[0].mxu0
    %v276 = vadd.f32 %v202, %v275
    %v277 = vpop.f32.mrb[0].mxu0
    %v278 = vadd.f32 %v206, %v277
    %279 = vdwg.mxu0
    %v280 = vmax.f32 %v276, 0.0
    %v281 = vmax.f32 %v278, 0.0
    %v282 = vld [vmem:[#allocation8] sm:$0xff]
    %v283 = vld [vmem:[#allocation8 + $0x8] sm:$0xff]
    %v284 = vld [vmem:[#allocation8 + $0x10] sm:$0xff]
    %v285 = vld [vmem:[#allocation8 + $0x18] sm:$0xff]
    %v286 = vld [vmem:[#allocation8 + $0x20] sm:$0xff]
    %v287 = vld [vmem:[#allocation8 + $0x28] sm:$0xff]
    %v288 = vld [vmem:[#allocation8 + $0x30] sm:$0xff]
    %v289 = vld [vmem:[#allocation8 + $0x38] sm:$0xff]
    %v290 = vld [vmem:[#allocation8 + $0x40] sm:$0xff]
    %v291 = vld [vmem:[#allocation8 + $0x48] sm:$0xff]
    %v292 = vld [vmem:[#allocation8 + $0x50] sm:$0xff]
    %v293 = vld [vmem:[#allocation8 + $0x58] sm:$0xff]
    %v294 = vld [vmem:[#allocation8 + $0x60] sm:$0xff]
    %v295 = vld [vmem:[#allocation8 + $0x68] sm:$0xff]
    %v296 = vld [vmem:[#allocation8 + $0x70] sm:$0xff]
    %v297 = vld [vmem:[#allocation8 + $0x78] sm:$0xff]
    %v298 = vld [vmem:[%s6] sm:$0x1]
    %v300 = vlaneseq
    %v301 = vshrl.u32 %v300, 7
    %v302 = vsub.s32 0, %v301
    %v303 = vrot.slane %v298, %v302
    %305 = vmatprep.subr.mxu0 0.0
    %306 = vmatpush1.msra.mxu0 %v282
    %307 = vmatprep.subr.mxu0 0.0
    %308 = vmatpush1.msra.mxu0 %v283
    %309 = vmatprep.subr.mxu0 0.0
    %310 = vmatpush1.msra.mxu0 %v284
    %311 = vmatprep.subr.mxu0 0.0
    %312 = vmatpush1.msra.mxu0 %v285
    %313 = vmatprep.subr.mxu0 0.0
    %314 = vmatpush1.msra.mxu0 %v286
    %315 = vmatprep.subr.mxu0 0.0
    %316 = vmatpush1.msra.mxu0 %v287
    %317 = vmatprep.subr.mxu0 0.0
    %318 = vmatpush1.msra.mxu0 %v288
    %319 = vmatprep.subr.mxu0 0.0
    %320 = vmatpush1.msra.mxu0 %v289
    %321 = vmatprep.subr.mxu0 0.0
    %322 = vmatpush1.msra.mxu0 %v290
    %323 = vmatprep.subr.mxu0 0.0
    %324 = vmatpush1.msra.mxu0 %v291
    %325 = vmatprep.subr.mxu0 0.0
    %326 = vmatpush1.msra.mxu0 %v292
    %327 = vmatprep.subr.mxu0 0.0
    %328 = vmatpush1.msra.mxu0 %v293
    %329 = vmatprep.subr.mxu0 0.0
    %330 = vmatpush1.msra.mxu0 %v294
    %331 = vmatprep.subr.mxu0 0.0
    %332 = vmatpush1.msra.mxu0 %v295
    %333 = vmatprep.subr.mxu0 0.0
    %334 = vmatpush1.msra.mxu0 %v296
    %335 = vmatprep.subr.mxu0 0.0
    %336 = vmatpush1.msra.mxu0 %v297
    %337 = vmatprep.subr.mxu0 0.0
    %338 = vmatpush1.msra.mxu0 0.0
    %339 = vmatprep.subr.mxu0 0.0
    %340 = vmatpush1.msra.mxu0 0.0
    %341 = vmatprep.subr.mxu0 0.0
    %342 = vmatpush1.msra.mxu0 0.0
    %343 = vmatprep.subr.mxu0 0.0
    %344 = vmatpush1.msra.mxu0 0.0
    %345 = vmatprep.subr.mxu0 0.0
    %346 = vmatpush1.msra.mxu0 0.0
    %347 = vmatprep.subr.mxu0 0.0
    %348 = vmatpush1.msra.mxu0 0.0
    %349 = vmatprep.subr.mxu0 0.0
    %350 = vmatpush1.msra.mxu0 0.0
    %351 = vmatprep.subr.mxu0 0.0
    %352 = vmatpush1.msra.mxu0 0.0
    %353 = vmatprep.subr.mxu0 0.0
    %354 = vmatpush1.msra.mxu0 0.0
    %355 = vmatprep.subr.mxu0 0.0
    %356 = vmatpush1.msra.mxu0 0.0
    %357 = vmatprep.subr.mxu0 0.0
    %358 = vmatpush1.msra.mxu0 0.0
    %359 = vmatprep.subr.mxu0 0.0
    %360 = vmatpush1.msra.mxu0 0.0
    %361 = vmatprep.subr.mxu0 0.0
    %362 = vmatpush1.msra.mxu0 0.0
    %363 = vmatprep.subr.mxu0 0.0
    %364 = vmatpush1.msra.mxu0 0.0
    %365 = vmatprep.subr.mxu0 0.0
    %366 = vmatpush1.msra.mxu0 0.0
    %367 = vmatprep.subr.mxu0 0.0
    %368 = vmatpush1.msra.mxu0 0.0
    %369 = vmatprep.mubr.f32.mxu0 0.0
    %370 = vmatmul.mubr.f32.gmra.mrb[0].mxu0 %v280
    %v371 = vpop.f32.mrb[0].mxu0
    %v372 = vadd.f32 %v303, %v371
    %v373 = vpop.f32.mrb[0].mxu0
    %374 = vmatprep.mubr.f32.mxu0 0.0
    %375 = vmatmul.mubr.f32.gmra.mrb[0].mxu0 %v281
    %v376 = vpop.f32.mrb[0].mxu0
    %v377 = vadd.f32 %v303, %v376
    %v378 = vpop.f32.mrb[0].mxu0
    %379 = vdwg.mxu0
    %380 = vadd.xlane.f32.xlu0 %v377
    %v381 = vpop.xlane.xlu0 %380
    %v382 = vrot.slane %v381, 4
    %v383 = vadd.f32 %v381, %v382
    %v384 = vrot.slane %v383, 2
    %v385 = vadd.f32 %v383, %v384
    %v386 = vrot.slane %v385, 1
    %v387 = vadd.f32 %v385, %v386
    %s388 = vtos %v387
    %v389 = vrcp.pop 32.0
    %s390 = vtos %v389
    %s391 = smul.f32 %s388, %s390
    %v392 = vstv %s391
    %v393 = vsub.f32 %v377, %v392
    %v394 = vadd.f32 %v372, %v393
    %395 = vst [vmem:[#allocation10] sm:$0xff] %v394
    // Predicated region
    $region46: #{tpu_custom_call.1} parent=1 // pred_check
      _
    $region47: #{tpu_custom_call.1} parent=1 // pred_check_branch
      %397 = sbr.rel (0) target = $region49
    $region48: #{tpu_custom_call.1} parent=1 // pred_region
      %s399 = ssub.s32 128, 128
      %400 = vsyncadd [#allocation4], %s399
      %s402 = sshll.u32 [#allocation10], 4
      %s403 = int_to_ptr.vmem [resolvable:$true] %s402
      %405 = dma.vmem_to_hbm [thread:$0]  %s403, 128, %s7, [#allocation4]
    $region49: #{tpu_custom_call.1} parent=1 // pred_fallthru
      _
    // Predicated region
    $region50: #{tpu_custom_call.1} parent=1 // pred_check
      _
    $region51: #{tpu_custom_call.1} parent=1 // pred_check_branch
      %407 = sbr.rel (0) target = $region53
    $region52: #{tpu_custom_call.1} parent=1 // pred_region
      %408 = dma.done [#allocation4], 128
    $region53: #{tpu_custom_call.1} parent=1 // pred_fallthru
      _
    %409 = vsyncpa [#allocation3], 1
    %410 = vsyncpa [#allocation6], 1
    %411 = vsyncpa [#allocation9], 1
    %412 = vsyncpa [#allocation4], 1

</llo_original>
